<compile_context>
chip_gen: v5e
topology: v5e:2x2
jax: 0.10.0
libtpu: 0.0.40
codegen_flags: <defaults>
</compile_context>

<pallas_src>
import math

import jax
import jax.numpy as jnp
from jax.experimental import pallas as pl
from jax.experimental.pallas import tpu as pltpu


# ------------------------------------ kernels --------------------------------------- #
def _concat_subl_kernel(*refs):
    """Row-window layout: refs = (x_0, ..., x_{n-1}, o).

    Blocks are (1, C_i, col_tile); each input is copied into its static
    sublane-row window of the (1, C_total, col_tile) output block.  The lane
    (last) dim is a multiple of 128 (or the full trailing extent), so stores
    are lane-dense.
    """
    o_ref = refs[-1]
    off = 0
    for x_ref in refs[:-1]:
        c = x_ref.shape[1]
        o_ref[:, off:off + c, :] = x_ref[...]
        off += c


def _concat_lane_kernel(*refs):
    """Column-window layout (last-axis concat): refs = (x_0, ..., x_{n-1}, o).

    Blocks are (row_tile, cols_i); each input is copied into its static
    lane-column window of the (row_tile, total_cols) output block.
    """
    o_ref = refs[-1]
    off = 0
    for x_ref in refs[:-1]:
        w = x_ref.shape[-1]
        o_ref[:, off:off + w] = x_ref[...]
        off += w


# ------------------------------------ wrapper --------------------------------------- #
def _vmem_budget_and_cap():
    """Generation-aware VMEM budget (per-step, double-buffering included)."""
    try:
        cap = int(pltpu.get_tpu_info().vmem_capacity_bytes)
    except Exception:
        cap = 64 * 1024 * 1024  # conservative default (v7x per-TC VMEM)
    budget = min(int(cap * 0.45), 48 * 1024 * 1024)
    return budget, cap


def concat(xs, dimension=1):
    """torch.cat(xs, dim=dimension) for a list of same-rank, same-dtype arrays."""
    assert len(xs) >= 1, "Concat needs at least one tensor"
    if len(xs) == 1:
        return xs[0]

    nd = xs[0].ndim
    d = dimension % nd
    ref_shape = xs[0].shape
    dtype = xs[0].dtype
    for x in xs:
        assert x.ndim == nd and x.dtype == dtype
        assert all(x.shape[i] == ref_shape[i] for i in range(nd) if i != d)
    # TODO(synk): torch.cat promotes mixed dtypes in some cases; uniform dtype assumed.

    itemsize = jnp.dtype(dtype).itemsize
    vmem_budget, vmem_cap = _vmem_budget_and_cap()

    pre = math.prod(ref_shape[:d])          # dims before the concat axis (empty -> 1)
    post = math.prod(ref_shape[d + 1:])     # dims after the concat axis (empty -> 1)
    chans = [x.shape[d] for x in xs]
    c_total = sum(chans)

    out_full_shape = list(ref_shape)
    out_full_shape[d] = c_total
    out_full_shape = tuple(out_full_shape)

    if post > 1:
        # ---------------- Row-window layout: concat axis on sublanes ----------------
        xs3 = [x.reshape(pre, c, post) for x, c in zip(xs, chans)]  # free reshapes

        # Lane tile sized so 2x(inputs + output) blocks fit the VMEM budget.
        col_budget = max(1, vmem_budget // (4 * c_total * itemsize))
        if post <= 128:
            col_tile = post                                   # full extent -> legal
        else:
            col_tile = min(post, max(128, (col_budget // 128) * 128))
        # v7x megacore: keep at least 2 steps along the parallel grid when possible.
        if pre == 1 and col_tile >= post and post >= 256:
            col_tile = max(128, ((post // 2) // 128) * 128)
        n_col = pl.cdiv(post, col_tile)

        needed = 4 * c_total * col_tile * itemsize
        vmem_limit = int(min(vmem_cap * 0.75, max(2 * needed, 32 * 1024 * 1024)))

        in_specs = [pl.BlockSpec((1, c, col_tile), lambda b, j: (b, 0, j))
                    for c in chans]
        out_spec = pl.BlockSpec((1, c_total, col_tile), lambda b, j: (b, 0, j))

        out3 = pl.pallas_call(
            _concat_subl_kernel,
            out_shape=jax.ShapeDtypeStruct((pre, c_total, post), dtype),
            grid=(pre, n_col),
            in_specs=in_specs,
            out_specs=out_spec,
            compiler_params=pltpu.CompilerParams(
                dimension_semantics=("parallel", "parallel"),
                vmem_limit_bytes=vmem_limit),
        )(*xs3)
        return out3.reshape(out_full_shape)

    # ---------------- Column-window layout: concat along the last axis ----------------
    rows = pre
    cols = chans                       # post == 1 -> column width == channel count
    total_cols = c_total
    xs2 = [x.reshape(rows, c) for x, c in zip(xs, cols)]  # free reshapes

    sub = max(8, 32 // itemsize)       # dtype-aware sublane multiple: f32 8, bf16 16, i8 32
    per_row = 4 * total_cols * itemsize            # (in + out) x double-buffering
    row_tile = max(1, vmem_budget // per_row)
    if row_tile >= rows:
        row_tile = rows
        if rows >= 2 * sub:            # v7x: keep >= 2 grid steps when the extent allows
            row_tile = max(sub, ((rows // 2) // sub) * sub)
    else:
        row_tile = max(sub, (row_tile // sub) * sub)
        # TODO(synk): if even `sub` rows exceed the budget (huge total_cols), switch to a
        # pure-DMA pl.ANY + pltpu.make_async_copy path to avoid VMEM staging entirely.

    needed = per_row * row_tile
    vmem_limit = int(min(vmem_cap * 0.75, max(2 * needed, 32 * 1024 * 1024)))

    in_specs = [pl.BlockSpec((row_tile, c), lambda r: (r, 0)) for c in cols]
    out_spec = pl.BlockSpec((row_tile, total_cols), lambda r: (r, 0))

    out2 = pl.pallas_call(
        _concat_lane_kernel,
        out_shape=jax.ShapeDtypeStruct((rows, total_cols), dtype),
        grid=(pl.cdiv(rows, row_tile),),
        in_specs=in_specs,
        out_specs=out_spec,
        compiler_params=pltpu.CompilerParams(
            dimension_semantics=("parallel",),
            vmem_limit_bytes=vmem_limit),
    )(*xs2)
    return out2.reshape(out_full_shape)


class Concat:
    """JAX/Pallas analogue of ultralytics Concat: concatenate a list along `dimension`."""

    def __init__(self, dimension=1):
        self.d = dimension

    def __call__(self, x):
        return concat(x, self.d)


# -------------------------------------- demo ----------------------------------------- #
if __name__ == "__main__":
    key = jax.random.PRNGKey(0)
    k1, k2, k3 = jax.random.split(key, 3)

    # Typical YOLO neck usage: concat feature maps along the channel dim (d=1).
    x0 = jax.random.normal(k1, (2, 4, 16, 16), jnp.float32)
    x1 = jax.random.normal(k2, (2, 8, 16, 16), jnp.float32)
    x2 = jax.random.normal(k3, (2, 4, 16, 16), jnp.float32)
    xs = [x0, x1, x2]

    module = Concat(dimension=1)
    out = jax.block_until_ready(module(xs))
    ref = jnp.concatenate(xs, axis=1)
    assert out.shape == (2, 16, 16, 16)
    assert jnp.array_equal(out, ref), "mismatch vs reference (dim=1)"

    # The module supports arbitrary `dimension`; exercise a trailing axis too.
    out_w = jax.block_until_ready(concat([x0, x0], dimension=3))
    assert jnp.array_equal(out_w, jnp.concatenate([x0, x0], axis=3)), \
        "mismatch vs reference (dim=3)"

    print("KERNEL_OK")
</pallas_src>

<mosaic_0001>
module attributes {stable_mosaic.version = 11 : i64} {
  func.func @_concat_subl_kernel(%arg0: i32, %arg1: i32, %arg2: memref<1x4x256xf32, #tpu.memory_space<vmem>>, %arg3: memref<1x8x256xf32, #tpu.memory_space<vmem>>, %arg4: memref<1x4x256xf32, #tpu.memory_space<vmem>>, %arg5: memref<1x16x256xf32, #tpu.memory_space<vmem>>) attributes {dimension_semantics = [#tpu.dimension_semantics<parallel>, #tpu.dimension_semantics<parallel>], iteration_bounds = array<i64: 2, 1>, scalar_prefetch = 0 : i64, scratch_operands = 0 : i64, tpu.core_type = #tpu.core_type<tc>, window_params = [{transform_indices = @transform_0, window_bounds = array<i64: 1, 4, 256>}, {transform_indices = @transform_1, window_bounds = array<i64: 1, 8, 256>}, {transform_indices = @transform_2, window_bounds = array<i64: 1, 4, 256>}, {transform_indices = @transform_3, window_bounds = array<i64: 1, 16, 256>}]} {
    %c0 = arith.constant 0 : index
    %c0_0 = arith.constant 0 : index
    %c0_1 = arith.constant 0 : index
    %0 = vector.load %arg2[%c0, %c0_0, %c0_1] : memref<1x4x256xf32, #tpu.memory_space<vmem>>, vector<1x4x256xf32>
    %c0_2 = arith.constant 0 : index
    %c0_3 = arith.constant 0 : index
    %c0_4 = arith.constant 0 : index
    %1 = vector.load %arg5[%c0_2, %c0_3, %c0_4] : memref<1x16x256xf32, #tpu.memory_space<vmem>>, vector<1x4x256xf32>
    tpu.vector_store %arg5[%c0_2, %c0_3, %c0_4], %0 {strides = array<i32>} : memref<1x16x256xf32, #tpu.memory_space<vmem>>, vector<1x4x256xf32>,
    %c0_5 = arith.constant 0 : index
    %c0_6 = arith.constant 0 : index
    %c0_7 = arith.constant 0 : index
    %2 = vector.load %arg3[%c0_5, %c0_6, %c0_7] : memref<1x8x256xf32, #tpu.memory_space<vmem>>, vector<1x8x256xf32>
    %c0_8 = arith.constant 0 : index
    %c4 = arith.constant 4 : index
    %c0_9 = arith.constant 0 : index
    %3 = vector.load %arg5[%c0_8, %c4, %c0_9] : memref<1x16x256xf32, #tpu.memory_space<vmem>>, vector<1x8x256xf32>
    tpu.vector_store %arg5[%c0_8, %c4, %c0_9], %2 {strides = array<i32>} : memref<1x16x256xf32, #tpu.memory_space<vmem>>, vector<1x8x256xf32>,
    %c0_10 = arith.constant 0 : index
    %c0_11 = arith.constant 0 : index
    %c0_12 = arith.constant 0 : index
    %4 = vector.load %arg4[%c0_10, %c0_11, %c0_12] : memref<1x4x256xf32, #tpu.memory_space<vmem>>, vector<1x4x256xf32>
    %c0_13 = arith.constant 0 : index
    %c12 = arith.constant 12 : index
    %c0_14 = arith.constant 0 : index
    %5 = vector.load %arg5[%c0_13, %c12, %c0_14] : memref<1x16x256xf32, #tpu.memory_space<vmem>>, vector<1x4x256xf32>
    tpu.vector_store %arg5[%c0_13, %c12, %c0_14], %4 {strides = array<i32>} : memref<1x16x256xf32, #tpu.memory_space<vmem>>, vector<1x4x256xf32>,
    return
  }
  func.func @transform_0(%arg0: i32, %arg1: i32) -> (i32, i32, i32) {
    %c0_i32 = arith.constant 0 : i32
    %c0_i32_0 = arith.constant 0 : i32
    return %arg0, %c0_i32, %arg1 : i32, i32, i32
  }
  func.func @transform_1(%arg0: i32, %arg1: i32) -> (i32, i32, i32) {
    %c0_i32 = arith.constant 0 : i32
    %c0_i32_0 = arith.constant 0 : i32
    return %arg0, %c0_i32, %arg1 : i32, i32, i32
  }
  func.func @transform_2(%arg0: i32, %arg1: i32) -> (i32, i32, i32) {
    %c0_i32 = arith.constant 0 : i32
    %c0_i32_0 = arith.constant 0 : i32
    return %arg0, %c0_i32, %arg1 : i32, i32, i32
  }
  func.func @transform_3(%arg0: i32, %arg1: i32) -> (i32, i32, i32) {
    %c0_i32 = arith.constant 0 : i32
    %c0_i32_0 = arith.constant 0 : i32
    return %arg0, %c0_i32, %arg1 : i32, i32, i32
  }
}

</mosaic_0001>

<llo_original>
// kernel: tpu_custom_call.1
$region0: #{tpu_custom_call.1}
  #allocation0 [shape = 'u32[]', space=smem, size = 0x4, offset = 0x4, fixed_abs, tag = 'smem constant byte address 0x4 - core index']
  #allocation1 [shape = 'u32[72,128]{1,0:T(1,128)}', space=vmem, size = 0x9000, scoped, tag = 'internal scratch']
  %s0 = inlined_call_operand.hbm [shape: f32[2,4,256], index: 0, kind: input, shape index: {}]
  %s1 = inlined_call_operand.hbm [shape: f32[2,8,256], index: 1, kind: input, shape index: {}]
  %s2 = inlined_call_operand.hbm [shape: f32[2,4,256], index: 2, kind: input, shape index: {}]
  %s3 = inlined_call_operand.hbm [shape: f32[2,16,256], index: 3, kind: output, shape index: {}]
  %s4 = sld [smem:[#allocation0]]
  $region57: #{tpu_custom_call.1} parent=0
    _
  %s6 = ssub.s32 1, %s4
  %s7 = scalar_select 0, %s6, %s4
  $region1: #{tpu_custom_call.1} parent=0
    #allocation2 [shape = 'u8[8192]{0}', space=vmem, size = 0x2000, scoped, tag = 'input window, operand 0']
    #allocation3 [shape = 's32[2]{0}', space=sflag, size = 0x8, scoped, tag = 'scoped memory for tpu_custom_call.1']
    #allocation4 [shape = 's32[2]{0}', space=sflag, size = 0x8, scoped, tag = 'scoped memory for tpu_custom_call.1']
    #allocation5 [shape = 'u8[16384]{0}', space=vmem, size = 0x4000, scoped, tag = 'input window, operand 1']
    #allocation6 [shape = 's32[2]{0}', space=sflag, size = 0x8, scoped, tag = 'scoped memory for tpu_custom_call.1']
    #allocation7 [shape = 'u8[8192]{0}', space=vmem, size = 0x2000, scoped, tag = 'input window, operand 2']
    #allocation8 [shape = 'u8[32768]{0}', space=vmem, size = 0x8000, scoped, tag = 'output window, operand 0']
    %8 = vsyncpa [#allocation3], 0
    %s9 = scalar_lea.sflag [#allocation3], 1
    %10 = vsyncpa %s9, 0
    %11 = vsyncpa [#allocation6], 0
    %s12 = scalar_lea.sflag [#allocation6], 1
    %13 = vsyncpa %s12, 0
    %14 = vsyncpa [#allocation4], 0
    %s15 = scalar_lea.sflag [#allocation4], 1
    %16 = vsyncpa %s15, 0
    loop: start=0, step=1, limit=4
    $region2: #{tpu_custom_call.1} parent=1 // loop_pre_header
      _
    $region3: #{tpu_custom_call.1} parent=1 // loop_header
      %s18 = sphi 0, %s22
      %p19 = scmp.ge.s32.totalorder %s18, 4
      %s25 = sphi 0, %s37
      %s26 = sphi 0, %s33
      %s27 = sphi 0, %s25
      %s28 = sphi 0, %s26
      %s29 = sphi 0, %s27
      %s30 = sphi 0, %s28
      %s42 = sphi 0, %s44
      %s45 = sphi 0, %s42
      %s46 = sphi 0, %s45
      %s62 = sphi 0, %s46
      %s70 = sphi 0, %s72
      %s73 = sphi 0, %s70
      %s74 = sphi 0, %s73
      %s90 = sphi 0, %s74
      %s98 = sphi 0, %s100
      %s101 = sphi 0, %s98
      %s102 = sphi 0, %s101
      %s118 = sphi 0, %s102
      %s126 = sphi 0, %s128
      %s129 = sphi 0, %s126
      %s130 = sphi 0, %s129
      %s146 = sphi 0, %s130
    $region4: #{tpu_custom_call.1} parent=1 // loop_header_branch
      %21 = sbr.rel (%p19) target = $region8
    $region5: #{tpu_custom_call.1} parent=1 // loop_body
      %s23 = ssub.s32 %s18, 1
      %s24 = ssub.s32 %s18, 2
      %s31 = sadd.s32 1, %s26
      %p32 = scmp.ge.s32.totalorder %s31, 1
      %s33 = scalar_select %p32, 0, %s31
      %s34 = sadd.s32 1, %s25
      %s35 = scalar_select %p32, %s34, %s25
      %p36 = scmp.ge.s32.totalorder %s35, 2
      %s37 = scalar_select %p36, 0, %s35
      %s38 = ssub.s32 %s25, %s37
      %s39 = ssub.s32 %s26, %s33
      %s40 = sor.u32 %s38, %s39
      %p41 = scmp.eq.s32.totalorder %s40, 0
      %s43 = sadd.s32 %s42, 1
      %s44 = scalar_select %p41, %s42, %s43
      %p47 = pneg %p41
      %p48 = scmp.eq.s32.totalorder %s18, 1
      %p49 = por %p47, %p48
      %p50 = scmp.ne.s32.totalorder %s42, %s45
      %p51 = scmp.eq.s32.totalorder %s18, 0
      %p52 = por %p50, %p51
      %p53 = scmp.ne.s32.totalorder %s42, %s45
      %p54 = scmp.eq.s32.totalorder %s23, 1
      %p55 = por %p53, %p54
      %p56 = scmp.ne.s32.totalorder %s45, %s46
      %p57 = scmp.eq.s32.totalorder %s23, 0
      %p58 = por %p56, %p57
      %p59 = scmp.ne.s32.totalorder %s45, %s46
      %p60 = scmp.eq.s32.totalorder %s24, 1
      %p61 = por %p59, %p60
      %p63 = scmp.ne.s32.totalorder %s46, %s62
      %p64 = scmp.eq.s32.totalorder %s24, 0
      %p65 = por %p63, %p64
      %s66 = ssub.s32 %s25, %s37
      %s67 = ssub.s32 %s26, %s33
      %s68 = sor.u32 %s66, %s67
      %p69 = scmp.eq.s32.totalorder %s68, 0
      %s71 = sadd.s32 %s70, 1
      %s72 = scalar_select %p69, %s70, %s71
      %p75 = pneg %p69
      %p76 = scmp.eq.s32.totalorder %s18, 1
      %p77 = por %p75, %p76
      %p78 = scmp.ne.s32.totalorder %s70, %s73
      %p79 = scmp.eq.s32.totalorder %s18, 0
      %p80 = por %p78, %p79
      %p81 = scmp.ne.s32.totalorder %s70, %s73
      %p82 = scmp.eq.s32.totalorder %s23, 1
      %p83 = por %p81, %p82
      %p84 = scmp.ne.s32.totalorder %s73, %s74
      %p85 = scmp.eq.s32.totalorder %s23, 0
      %p86 = por %p84, %p85
      %p87 = scmp.ne.s32.totalorder %s73, %s74
      %p88 = scmp.eq.s32.totalorder %s24, 1
      %p89 = por %p87, %p88
      %p91 = scmp.ne.s32.totalorder %s74, %s90
      %p92 = scmp.eq.s32.totalorder %s24, 0
      %p93 = por %p91, %p92
      %s94 = ssub.s32 %s25, %s37
      %s95 = ssub.s32 %s26, %s33
      %s96 = sor.u32 %s94, %s95
      %p97 = scmp.eq.s32.totalorder %s96, 0
      %s99 = sadd.s32 %s98, 1
      %s100 = scalar_select %p97, %s98, %s99
      %p103 = pneg %p97
      %p104 = scmp.eq.s32.totalorder %s18, 1
      %p105 = por %p103, %p104
      %p106 = scmp.ne.s32.totalorder %s98, %s101
      %p107 = scmp.eq.s32.totalorder %s18, 0
      %p108 = por %p106, %p107
      %p109 = scmp.ne.s32.totalorder %s98, %s101
      %p110 = scmp.eq.s32.totalorder %s23, 1
      %p111 = por %p109, %p110
      %p112 = scmp.ne.s32.totalorder %s101, %s102
      %p113 = scmp.eq.s32.totalorder %s23, 0
      %p114 = por %p112, %p113
      %p115 = scmp.ne.s32.totalorder %s101, %s102
      %p116 = scmp.eq.s32.totalorder %s24, 1
      %p117 = por %p115, %p116
      %p119 = scmp.ne.s32.totalorder %s102, %s118
      %p120 = scmp.eq.s32.totalorder %s24, 0
      %p121 = por %p119, %p120
      %s122 = ssub.s32 %s25, %s37
      %s123 = ssub.s32 %s26, %s33
      %s124 = sor.u32 %s122, %s123
      %p125 = scmp.eq.s32.totalorder %s124, 0
      %s127 = sadd.s32 %s126, 1
      %s128 = scalar_select %p125, %s126, %s127
      %p131 = pneg %p125
      %p132 = scmp.eq.s32.totalorder %s18, 1
      %p133 = por %p131, %p132
      %p134 = scmp.ne.s32.totalorder %s126, %s129
      %p135 = scmp.eq.s32.totalorder %s18, 0
      %p136 = por %p134, %p135
      %p137 = scmp.ne.s32.totalorder %s126, %s129
      %p138 = scmp.eq.s32.totalorder %s23, 1
      %p139 = por %p137, %p138
      %p140 = scmp.ne.s32.totalorder %s129, %s130
      %p141 = scmp.eq.s32.totalorder %s23, 0
      %p142 = por %p140, %p141
      %p143 = scmp.ne.s32.totalorder %s129, %s130
      %p144 = scmp.eq.s32.totalorder %s24, 1
      %p145 = por %p143, %p144
      %p147 = scmp.ne.s32.totalorder %s130, %s146
      %p148 = scmp.eq.s32.totalorder %s24, 0
      %p149 = por %p147, %p148
      %p150 = scmp.le.s32.totalorder 1, %s18
      %p151 = scmp.lt.s32.totalorder %s18, 3
      %p152 = pnand %p150, %p151
      %p153 = pneg %p152
      // Predicated region
      $region9: #{tpu_custom_call.1} parent=5 // pred_check
        _
      $region10: #{tpu_custom_call.1} parent=5 // pred_check_branch
        %155 = sbr.rel (%p152) target = $region12
      $region11: #{tpu_custom_call.1} parent=5 // pred_region
        %s156 = ssub.s32 %s18, 1
      $region12: #{tpu_custom_call.1} parent=5 // pred_fallthru
        _
      %p157 = scmp.lt.s32.totalorder %s18, 2
      // Predicated region
      $region13: #{tpu_custom_call.1} parent=5 // pred_check
        %p158 = pneg %p157
      $region14: #{tpu_custom_call.1} parent=5 // pred_check_branch
        %160 = sbr.rel (%p158) target = $region16
      $region15: #{tpu_custom_call.1} parent=5 // pred_region
        // Predicated region
        $region17: #{tpu_custom_call.1} parent=15 // pred_check
          %p161 = pneg %p52
        $region18: #{tpu_custom_call.1} parent=15 // pred_check_branch
          %163 = sbr.rel (%p161) target = $region20
        $region19: #{tpu_custom_call.1} parent=15 // pred_region
          %s164 = sand.u32 %s42, 1
          %s165 = scalar_lea.sflag [#allocation3], %s164
          %s166 = sand.u32 %s42, 1
          %s167 = smul.addr %s166, 8
          %s168 = scalar_lea.vmem [#allocation2], %s167
          %s169 = smul.u32 2, %s26
          %171 = vsyncadd %s165, 0
          %s172 = smul.addr %s25, 2
          %s173 = sadd.s32 %s169, %s172
          %s174 = smul.addr %s173, 4
          %s175 = scalar_lea.hbm %s0, %s174
          %s177 = sshll.u32 %s175, 4
          %s178 = int_to_ptr.hbm [resolvable:$true] %s177
          %s179 = sshll.u32 %s168, 4
          %s180 = int_to_ptr.vmem [resolvable:$true] %s179
          %182 = dma.hbm_to_vmem [thread:$0]  %s178, 128, %s180, %s165
        $region20: #{tpu_custom_call.1} parent=15 // pred_fallthru
          _
        // Predicated region
        $region21: #{tpu_custom_call.1} parent=15 // pred_check
          %p183 = pneg %p80
        $region22: #{tpu_custom_call.1} parent=15 // pred_check_branch
          %185 = sbr.rel (%p183) target = $region24
        $region23: #{tpu_custom_call.1} parent=15 // pred_region
          %s186 = sand.u32 %s18, 1
          %s187 = scalar_lea.sflag [#allocation6], %s186
          %s188 = sand.u32 %s70, 1
          %s189 = smul.addr %s188, 16
          %s190 = scalar_lea.vmem [#allocation5], %s189
          %s191 = smul.u32 2, %s26
          %193 = vsyncadd %s187, 0
          %s194 = smul.addr %s25, 2
          %s195 = sadd.s32 %s191, %s194
          %s196 = smul.addr %s195, 8
          %s197 = scalar_lea.hbm %s1, %s196
          %s199 = sshll.u32 %s197, 4
          %s200 = int_to_ptr.hbm [resolvable:$true] %s199
          %s201 = sshll.u32 %s190, 4
          %s202 = int_to_ptr.vmem [resolvable:$true] %s201
          %204 = dma.hbm_to_vmem [thread:$0]  %s200, 256, %s202, %s187
        $region24: #{tpu_custom_call.1} parent=15 // pred_fallthru
          _
        // Predicated region
        $region25: #{tpu_custom_call.1} parent=15 // pred_check
          %p205 = pneg %p108
        $region26: #{tpu_custom_call.1} parent=15 // pred_check_branch
          %207 = sbr.rel (%p205) target = $region28
        $region27: #{tpu_custom_call.1} parent=15 // pred_region
          %s208 = sand.u32 %s18, 1
          %s209 = scalar_lea.sflag [#allocation6], %s208
          %s210 = sand.u32 %s98, 1
          %s211 = smul.addr %s210, 8
          %s212 = scalar_lea.vmem [#allocation7], %s211
          %s213 = smul.u32 2, %s26
          %215 = vsyncadd %s209, 0
          %s216 = smul.addr %s25, 2
          %s217 = sadd.s32 %s213, %s216
          %s218 = smul.addr %s217, 4
          %s219 = scalar_lea.hbm %s2, %s218
          %s221 = sshll.u32 %s219, 4
          %s222 = int_to_ptr.hbm [resolvable:$true] %s221
          %s223 = sshll.u32 %s212, 4
          %s224 = int_to_ptr.vmem [resolvable:$true] %s223
          %226 = dma.hbm_to_vmem [thread:$0]  %s222, 128, %s224, %s209
        $region28: #{tpu_custom_call.1} parent=15 // pred_fallthru
          _
      $region16: #{tpu_custom_call.1} parent=5 // pred_fallthru
        _
      %p227 = scmp.le.s32.totalorder 1, %s18
      %p228 = scmp.lt.s32.totalorder %s18, 3
      %p229 = pnand %p227, %p228
      %p230 = pneg %p229
      // Predicated region
      $region29: #{tpu_custom_call.1} parent=5 // pred_check
        _
      $region30: #{tpu_custom_call.1} parent=5 // pred_check_branch
        %232 = sbr.rel (%p229) target = $region32
      $region31: #{tpu_custom_call.1} parent=5 // pred_region
        %s233 = ssub.s32 %s18, 1
        %s234 = sand.u32 %s45, 1
        %s235 = scalar_lea.sflag [#allocation3], %s234
        %s236 = sand.u32 %s45, 1
        %s237 = smul.addr %s236, 8
        %s238 = scalar_lea.vmem [#allocation2], %s237
        // Predicated region
        $region33: #{tpu_custom_call.1} parent=31 // pred_check
          %p239 = pneg %p58
        $region34: #{tpu_custom_call.1} parent=31 // pred_check_branch
          %241 = sbr.rel (%p239) target = $region36
        $region35: #{tpu_custom_call.1} parent=31 // pred_region
          %243 = dma.done %s235, 128
        $region36: #{tpu_custom_call.1} parent=31 // pred_fallthru
          _
        %s244 = sand.u32 %s23, 1
        %s245 = scalar_lea.sflag [#allocation6], %s244
        %s246 = sand.u32 %s73, 1
        %s247 = smul.addr %s246, 16
        %s248 = scalar_lea.vmem [#allocation5], %s247
        // Predicated region
        $region37: #{tpu_custom_call.1} parent=31 // pred_check
          %p249 = pneg %p86
        $region38: #{tpu_custom_call.1} parent=31 // pred_check_branch
          %251 = sbr.rel (%p249) target = $region40
        $region39: #{tpu_custom_call.1} parent=31 // pred_region
          %253 = dma.done %s245, 256
        $region40: #{tpu_custom_call.1} parent=31 // pred_fallthru
          _
        %s254 = sand.u32 %s23, 1
        %s255 = scalar_lea.sflag [#allocation6], %s254
        %s256 = sand.u32 %s101, 1
        %s257 = smul.addr %s256, 8
        %s258 = scalar_lea.vmem [#allocation7], %s257
        // Predicated region
        $region41: #{tpu_custom_call.1} parent=31 // pred_check
          %p259 = pneg %p114
        $region42: #{tpu_custom_call.1} parent=31 // pred_check_branch
          %261 = sbr.rel (%p259) target = $region44
        $region43: #{tpu_custom_call.1} parent=31 // pred_region
          %263 = dma.done %s255, 128
        $region44: #{tpu_custom_call.1} parent=31 // pred_fallthru
          _
        %s264 = sand.u32 %s45, 1
        %s265 = scalar_lea.sflag [#allocation3], %s264
        %s266 = sand.u32 %s45, 1
        %s267 = smul.addr %s266, 8
        %s268 = scalar_lea.vmem [#allocation2], %s267
        %p269 = pneg %p58
        %p270 = pneg %p55
        %s271 = sand.u32 %s23, 1
        %s272 = scalar_lea.sflag [#allocation6], %s271
        %s273 = sand.u32 %s73, 1
        %s274 = smul.addr %s273, 16
        %s275 = scalar_lea.vmem [#allocation5], %s274
        %p276 = pneg %p86
        %p277 = pneg %p83
        %s278 = sand.u32 %s23, 1
        %s279 = scalar_lea.sflag [#allocation6], %s278
        %s280 = sand.u32 %s101, 1
        %s281 = smul.addr %s280, 8
        %s282 = scalar_lea.vmem [#allocation7], %s281
        %p283 = pneg %p114
        %p284 = pneg %p111
        %p285 = pneg %p142
        %p286 = pneg %p139
        %s287 = sand.u32 %s129, 1
        %s288 = scalar_lea.sflag [#allocation4], %s287
        %s289 = sand.u32 %s129, 1
        %s290 = smul.addr %s289, 32
        %s291 = scalar_lea.vmem [#allocation8], %s290
        %s292 = smul.u32 2, %s28
        %s293 = smul.u32 2, %s28
        %s294 = smul.u32 2, %s28
        %s295 = smul.u32 2, %s28
        %v296 = vld [vmem:[%s238] sm:$0xff]
        %298 = vst [vmem:[#allocation1] ss:$2 sm:$0xff] %v296
        %v299 = vld.sshfl [vmem:[#allocation1] sm:$0xff pattern:$0x75316420]
        %v300 = vld.sshfl [vmem:[#allocation1 + $0x8] sm:$0xff pattern:$0x75316420]
        %303 = vst [vmem:[%s291] sm:$0xf] %v299
        %304 = vst [vmem:[%s291 + $0x8] sm:$0xf] %v300
        %v305 = vld [vmem:[%s248] sm:$0xff]
        %v306 = vld [vmem:[%s248 + $0x8] sm:$0xff]
        %v309 = vrot.slane %v305, 4
        %v310 = vrot.slane %v306, 4
        %313 = vst [vmem:[%s291] sm:$0xf0] %v309
        %314 = vst [vmem:[%s291 + $0x8] sm:$0xf0] %v310
        %315 = vst [vmem:[%s291 + $0x10] sm:$0xf] %v309
        %316 = vst [vmem:[%s291 + $0x18] sm:$0xf] %v310
        %v317 = vld [vmem:[%s258] sm:$0xff]
        %s319 = scalar_lea.vmem [#allocation1], 1
        %320 = vst [vmem:[%s319] ss:$2 sm:$0xff] %v317
        %v321 = vld.sshfl [vmem:[#allocation1] sm:$0xff pattern:$0x75316420]
        %v322 = vld.sshfl [vmem:[#allocation1 + $0x8] sm:$0xff pattern:$0x75316420]
        %325 = vst [vmem:[%s291 + $0x10] sm:$0xf0] %v321
        %326 = vst [vmem:[%s291 + $0x18] sm:$0xf0] %v322
        %s327 = sand.u32 %s129, 1
        %s328 = scalar_lea.sflag [#allocation4], %s327
        %s329 = sand.u32 %s129, 1
        %s330 = smul.addr %s329, 32
        %s331 = scalar_lea.vmem [#allocation8], %s330
        // Predicated region
        $region45: #{tpu_custom_call.1} parent=31 // pred_check
          %p332 = pneg %p139
        $region46: #{tpu_custom_call.1} parent=31 // pred_check_branch
          %334 = sbr.rel (%p332) target = $region48
        $region47: #{tpu_custom_call.1} parent=31 // pred_region
          %s335 = smul.u32 2, %s28
          %337 = vsyncadd %s328, 0
          %s338 = smul.addr %s27, 4
          %s339 = sadd.s32 %s335, %s338
          %s340 = smul.addr %s339, 8
          %s341 = scalar_lea.hbm %s3, %s340
          %s342 = sshll.u32 %s331, 4
          %s343 = int_to_ptr.vmem [resolvable:$true] %s342
          %s344 = sshll.u32 %s341, 4
          %s345 = int_to_ptr.hbm [resolvable:$true] %s344
          %350 = dma.vmem_to_hbm [thread:$0]  %s343, 512, %s345, %s328, 256, 256, 16
        $region48: #{tpu_custom_call.1} parent=31 // pred_fallthru
          _
      $region32: #{tpu_custom_call.1} parent=5 // pred_fallthru
        _
      %p351 = scmp.le.s32.totalorder 2, %s18
      // Predicated region
      $region49: #{tpu_custom_call.1} parent=5 // pred_check
        %p352 = pneg %p351
      $region50: #{tpu_custom_call.1} parent=5 // pred_check_branch
        %354 = sbr.rel (%p352) target = $region52
      $region51: #{tpu_custom_call.1} parent=5 // pred_region
        %s355 = ssub.s32 %s18, 2
        // Predicated region
        $region53: #{tpu_custom_call.1} parent=51 // pred_check
          %p356 = pneg %p145
        $region54: #{tpu_custom_call.1} parent=51 // pred_check_branch
          %358 = sbr.rel (%p356) target = $region56
        $region55: #{tpu_custom_call.1} parent=51 // pred_region
          %s359 = sand.u32 %s130, 1
          %s360 = scalar_lea.sflag [#allocation4], %s359
          %s361 = sand.u32 %s130, 1
          %s362 = smul.addr %s361, 32
          %s363 = scalar_lea.vmem [#allocation8], %s362
          %365 = dma.done %s360, 512
        $region56: #{tpu_custom_call.1} parent=51 // pred_fallthru
          _
      $region52: #{tpu_custom_call.1} parent=5 // pred_fallthru
        _
    $region6: #{tpu_custom_call.1} parent=1 // loop_footer
      %s22 = sadd.s32 1, %s18
    $region7: #{tpu_custom_call.1} parent=1 // loop_footer_branch
      %17 = sbr.rel target = $region3
    $region8: #{tpu_custom_call.1} parent=1 // loop_exit
      _
    %366 = vsyncpa [#allocation3], 1
    %s367 = scalar_lea.sflag [#allocation3], 1
    %368 = vsyncpa %s367, 1
    %369 = vsyncpa [#allocation6], 1
    %s370 = scalar_lea.sflag [#allocation6], 1
    %371 = vsyncpa %s370, 1
    %372 = vsyncpa [#allocation4], 1
    %s373 = scalar_lea.sflag [#allocation4], 1
    %374 = vsyncpa %s373, 1

</llo_original>
